<compile_context>
chip_gen: v6e
topology: v6e:2x2x1
jax: 0.10.0
libtpu: 0.0.40
codegen_flags: <defaults>
</compile_context>

<pallas_src>
import functools
import math

import numpy as np
import jax
import jax.numpy as jnp
from jax import lax
from jax.experimental import pallas as pl
from jax.experimental.pallas import tpu as pltpu


_AGG_TN = 128      # node tile for aggregation (full MXU M)
_AGG_TE = 128      # edge tile for aggregation
_MM_CHUNK = 8      # node-row chunk for the masked min/max reduction
_SENT = 3.0e30     # additive masking sentinel (|msg| + _SENT stays far from f32 max)


def _round_up(n, m):
    return ((n + m - 1) // m) * m


def _pad_rows(a, rows_to, value=0.0):
    r = a.shape[0]
    if rows_to == r:
        return a
    pad = [(0, rows_to - r)] + [(0, 0)] * (a.ndim - 1)
    return jnp.pad(a, pad, constant_values=value)


def _row_tile(rows_padded, cap=512):
    for t in (512, 256, 128):
        if t <= cap and rows_padded % t == 0:
            return t
    return 128


# ----------------------------------------------------------------------------
# Generic tiled linear (node_emb / edge_emb)
# ----------------------------------------------------------------------------
def _linear_kernel(x_ref, w_ref, b_ref, o_ref, *, relu):
    y = jnp.dot(x_ref[...], w_ref[...], preferred_element_type=jnp.float32) + b_ref[...]
    if relu:
        y = jnp.maximum(y, 0.0)
    o_ref[...] = y


def pallas_linear(x, w, b, relu=False):
    M, K = x.shape
    N = w.shape[1]
    tile = _row_tile(M)
    return pl.pallas_call(
        functools.partial(_linear_kernel, relu=relu),
        out_shape=jax.ShapeDtypeStruct((M, N), jnp.float32),
        grid=(M // tile,),
        in_specs=[
            pl.BlockSpec((tile, K), lambda i: (i, 0)),
            pl.BlockSpec((K, N), lambda i: (0, 0)),
            pl.BlockSpec((1, N), lambda i: (0, 0)),
        ],
        out_specs=pl.BlockSpec((tile, N), lambda i: (i, 0)),
        compiler_params=pltpu.CompilerParams(dimension_semantics=("parallel",)),
    )(x, w, b.reshape(1, N))


# ----------------------------------------------------------------------------
# Edge messages: msg = [x_dst | x_src | e] @ W_msg + b   (edge_encoder folded,
# single K=3H MXU dot via in-VMEM concat)
# ----------------------------------------------------------------------------
def _edge_msg_kernel(xd_ref, xs_ref, e_ref, w_ref, b_ref, o_ref):
    xcat = jnp.concatenate([xd_ref[...], xs_ref[...], e_ref[...]], axis=-1)
    o_ref[...] = jnp.dot(xcat, w_ref[...], preferred_element_type=jnp.float32) + b_ref[...]


def edge_messages(x_dst, x_src, e, w_msg, b_msg):
    Ep, H = e.shape
    tile = _row_tile(Ep)
    return pl.pallas_call(
        _edge_msg_kernel,
        out_shape=jax.ShapeDtypeStruct((Ep, H), jnp.float32),
        grid=(Ep // tile,),
        in_specs=[
            pl.BlockSpec((tile, H), lambda i: (i, 0)),
            pl.BlockSpec((tile, H), lambda i: (i, 0)),
            pl.BlockSpec((tile, H), lambda i: (i, 0)),
            pl.BlockSpec((3 * H, H), lambda i: (0, 0)),
            pl.BlockSpec((1, H), lambda i: (0, 0)),
        ],
        out_specs=pl.BlockSpec((tile, H), lambda i: (i, 0)),
        compiler_params=pltpu.CompilerParams(dimension_semantics=("parallel",)),
    )(x_dst, x_src, e, w_msg, b_msg.reshape(1, H))


# ----------------------------------------------------------------------------
# PNA aggregation (mean/min/max/std + degree scalers) fused with post_nn∘lin,
# plus BN partial statistics.  Edges are sorted by dst; scalar-prefetched
# per-node-tile edge-block ranges restrict each node tile to its own edges.
# ----------------------------------------------------------------------------
def _agg_post_kernel(sb_ref, nb_ref, dst_ref, msg_ref, x_ref,
                     wx_ref, wpost_ref, b_ref,
                     conv_ref, bns1_ref, bns2_ref,
                     cnt_ref, s1_ref, s2_ref, mn_ref, mx_ref,
                     *, tn, n_valid, avg_deg_log):
    n = pl.program_id(0)
    e_step = pl.program_id(1)
    base = n * tn

    @pl.when(e_step == 0)
    def _():
        cnt_ref[...] = jnp.zeros(cnt_ref.shape, jnp.float32)
        s1_ref[...] = jnp.zeros(s1_ref.shape, jnp.float32)
        s2_ref[...] = jnp.zeros(s2_ref.shape, jnp.float32)
        mn_ref[...] = jnp.full(mn_ref.shape, _SENT, jnp.float32)
        mx_ref[...] = jnp.full(mx_ref.shape, -_SENT, jnp.float32)

    @pl.when(e_step < nb_ref[n])
    def _():
        msgs = msg_ref[...]                                   # (TE, H)
        te, h = msgs.shape
        dst_row = dst_ref[...]                                # (1, TE) int32
        ids = base + lax.broadcasted_iota(jnp.int32, (tn, te), 0)
        mask = (ids == dst_row).astype(jnp.float32)           # (TN, TE) segment mask

        cnt_ref[...] += jnp.sum(mask, axis=1, keepdims=True)
        s1_ref[...] += jnp.dot(mask, msgs, preferred_element_type=jnp.float32)
        s2_ref[...] += jnp.dot(mask, msgs * msgs, preferred_element_type=jnp.float32)

        # Masked running min/max, chunked over node rows so only ~(8,TE,H)
        # temporaries are live at once (no (TN,TE,H) cube).
        nc = _MM_CHUNK

        @pl.loop(0, tn // nc)
        def _(r):
            roff = pl.multiple_of(r * nc, nc)
            ids_c = (base + roff) + lax.broadcasted_iota(jnp.int32, (nc, te), 0)
            pen = jnp.where(ids_c == dst_row, 0.0, _SENT)      # (nc, TE)
            msg3 = lax.broadcast_in_dim(msgs, (nc, te, h), (1, 2))
            pen3 = lax.broadcast_in_dim(pen, (nc, te, h), (0, 1))
            mn_ref[pl.ds(roff, nc), :] = jnp.minimum(
                mn_ref[pl.ds(roff, nc), :], jnp.min(msg3 + pen3, axis=1))
            mx_ref[pl.ds(roff, nc), :] = jnp.maximum(
                mx_ref[pl.ds(roff, nc), :], jnp.max(msg3 - pen3, axis=1))

    @pl.when(e_step == pl.num_programs(1) - 1)
    def _():
        hdim = s1_ref.shape[1]
        cnt = cnt_ref[...]
        deg = jnp.maximum(cnt, 1.0)                           # PyG clamps degree at 1
        inv_deg = 1.0 / deg
        mean = s1_ref[...] * inv_deg
        var = s2_ref[...] * inv_deg - mean * mean             # PyG VarAggregation formula
        std = jnp.sqrt(jnp.maximum(var, 0.0) + 1e-5)          # PyG StdAggregation
        has = cnt > 0.0
        minv = jnp.where(has, mn_ref[...], 0.0)
        maxv = jnp.where(has, mx_ref[...], 0.0)
        agg4 = jnp.concatenate([mean, minv, maxv, std], axis=-1)     # (TN, 4H)
        log_deg = jnp.log(deg + 1.0)
        amp = log_deg * (1.0 / avg_deg_log)
        att = avg_deg_log * pl.reciprocal(log_deg, approx=True)
        # fused cat([x, agg*scalers]) @ (W_post @ W_lin) + b, scaler blocks fused
        y = jnp.dot(agg4, wpost_ref[...], preferred_element_type=jnp.float32)  # (TN, 3H)
        conv = (jnp.dot(x_ref[...], wx_ref[...], preferred_element_type=jnp.float32)
                + y[:, 0:hdim]
                + amp * y[:, hdim:2 * hdim]
                + att * y[:, 2 * hdim:3 * hdim]
                + b_ref[...])
        conv_ref[...] = conv
        # BatchNorm partial stats over real (non-padded) node rows.
        row_ids = base + lax.broadcasted_iota(jnp.int32, (tn, hdim), 0)
        valid = (row_ids < n_valid).astype(jnp.float32)
        cv = conv * valid
        s_row = jnp.sum(cv, axis=0, keepdims=True)            # (1, H)
        q_row = jnp.sum(cv * conv, axis=0, keepdims=True)      # (1, H)
        bns1_ref[...] = jnp.broadcast_to(s_row, (8, hdim))
        bns2_ref[...] = jnp.broadcast_to(q_row, (8, hdim))


def pna_aggregate_post(msgs, dst_padded, x, wx, wpost, b, avg_deg_log,
                       start_blk, num_blk, max_nb, n_valid,
                       tn=_AGG_TN, te=_AGG_TE):
    Ep, H = msgs.shape
    Np = x.shape[0]
    num_ntiles = Np // tn
    dst2d = dst_padded.reshape(1, Ep).astype(jnp.int32)

    def dst_map(n, e, sb, nb):
        return (0, sb[n] + jnp.minimum(e, nb[n] - 1))

    def msg_map(n, e, sb, nb):
        return (sb[n] + jnp.minimum(e, nb[n] - 1), 0)

    kernel = functools.partial(_agg_post_kernel, tn=tn, n_valid=n_valid,
                               avg_deg_log=avg_deg_log)
    conv, bns1, bns2 = pl.pallas_call(
        kernel,
        out_shape=(
            jax.ShapeDtypeStruct((Np, H), jnp.float32),
            jax.ShapeDtypeStruct((num_ntiles * 8, H), jnp.float32),
            jax.ShapeDtypeStruct((num_ntiles * 8, H), jnp.float32),
        ),
        grid_spec=pltpu.PrefetchScalarGridSpec(
            num_scalar_prefetch=2,
            grid=(num_ntiles, max_nb),
            in_specs=[
                pl.BlockSpec((1, te), dst_map),
                pl.BlockSpec((te, H), msg_map),
                pl.BlockSpec((tn, H), lambda n, e, sb, nb: (n, 0)),
                pl.BlockSpec((H, H), lambda n, e, sb, nb: (0, 0)),
                pl.BlockSpec((4 * H, 3 * H), lambda n, e, sb, nb: (0, 0)),
                pl.BlockSpec((1, H), lambda n, e, sb, nb: (0, 0)),
            ],
            out_specs=(
                pl.BlockSpec((tn, H), lambda n, e, sb, nb: (n, 0)),
                pl.BlockSpec((8, H), lambda n, e, sb, nb: (n, 0)),
                pl.BlockSpec((8, H), lambda n, e, sb, nb: (n, 0)),
            ),
            scratch_shapes=[
                pltpu.VMEM((tn, 1), jnp.float32),   # count
                pltpu.VMEM((tn, H), jnp.float32),   # sum
                pltpu.VMEM((tn, H), jnp.float32),   # sum of squares
                pltpu.VMEM((tn, H), jnp.float32),   # running min
                pltpu.VMEM((tn, H), jnp.float32),   # running max
            ],
        ),
        compiler_params=pltpu.CompilerParams(
            dimension_semantics=("parallel", "arbitrary")),
    )(start_blk, num_blk, dst2d, msgs, x, wx, wpost, b.reshape(1, H))
    return conv, bns1, bns2


# ----------------------------------------------------------------------------
# BatchNorm (global stats from fused partial sums) + ReLU + residual epilogue
# ----------------------------------------------------------------------------
def _bn_relu_res_kernel(x_ref, y_ref, mu_ref, var_ref, g_ref, b_ref, o_ref, *, eps):
    yhat = (y_ref[...] - mu_ref[...]) * lax.rsqrt(var_ref[...] + eps) * g_ref[...] \
        + b_ref[...]
    o_ref[...] = (x_ref[...] + jnp.maximum(yhat, 0.0)) * 0.5


def bn_relu_residual(x, y, mu, var, gamma, beta, eps=1e-5):
    Np, H = x.shape
    tile = _row_tile(Np)
    return pl.pallas_call(
        functools.partial(_bn_relu_res_kernel, eps=eps),
        out_shape=jax.ShapeDtypeStruct((Np, H), jnp.float32),
        grid=(Np // tile,),
        in_specs=[
            pl.BlockSpec((tile, H), lambda i: (i, 0)),
            pl.BlockSpec((tile, H), lambda i: (i, 0)),
            pl.BlockSpec((1, H), lambda i: (0, 0)),
            pl.BlockSpec((1, H), lambda i: (0, 0)),
            pl.BlockSpec((1, H), lambda i: (0, 0)),
            pl.BlockSpec((1, H), lambda i: (0, 0)),
        ],
        out_specs=pl.BlockSpec((tile, H), lambda i: (i, 0)),
        compiler_params=pltpu.CompilerParams(dimension_semantics=("parallel",)),
    )(x, y, mu.reshape(1, H), var.reshape(1, H),
      gamma.reshape(1, H), beta.reshape(1, H))


# ----------------------------------------------------------------------------
# Edge-update MLP with residual; single K=3H dot via in-VMEM concat
# ----------------------------------------------------------------------------
def _edge_mlp_res_kernel(xs_ref, xd_ref, e_ref, w1_ref, b1_ref, w2_ref, b2_ref, o_ref):
    xcat = jnp.concatenate([xs_ref[...], xd_ref[...], e_ref[...]], axis=-1)
    h = jnp.maximum(
        jnp.dot(xcat, w1_ref[...], preferred_element_type=jnp.float32) + b1_ref[...], 0.0)
    upd = jnp.dot(h, w2_ref[...], preferred_element_type=jnp.float32) + b2_ref[...]
    o_ref[...] = e_ref[...] + upd * 0.5


def edge_mlp_residual(x_src, x_dst, e, w1, b1, w2, b2):
    Ep, H = e.shape
    tile = _row_tile(Ep)
    return pl.pallas_call(
        _edge_mlp_res_kernel,
        out_shape=jax.ShapeDtypeStruct((Ep, H), jnp.float32),
        grid=(Ep // tile,),
        in_specs=[
            pl.BlockSpec((tile, H), lambda i: (i, 0)),
            pl.BlockSpec((tile, H), lambda i: (i, 0)),
            pl.BlockSpec((tile, H), lambda i: (i, 0)),
            pl.BlockSpec((3 * H, H), lambda i: (0, 0)),
            pl.BlockSpec((1, H), lambda i: (0, 0)),
            pl.BlockSpec((H, H), lambda i: (0, 0)),
            pl.BlockSpec((1, H), lambda i: (0, 0)),
        ],
        out_specs=pl.BlockSpec((tile, H), lambda i: (i, 0)),
        compiler_params=pltpu.CompilerParams(dimension_semantics=("parallel",)),
    )(x_src, x_dst, e, w1, b1.reshape(1, H), w2, b2.reshape(1, H))


# ----------------------------------------------------------------------------
# Parameter construction (torch.nn.Linear-style init) + host-side weight folding
# ----------------------------------------------------------------------------
def init_linear(key, fan_in, fan_out):
    k1, k2 = jax.random.split(key)
    bound = 1.0 / math.sqrt(fan_in)
    w = jax.random.uniform(k1, (fan_in, fan_out), jnp.float32, -bound, bound)
    b = jax.random.uniform(k2, (fan_out,), jnp.float32, -bound, bound)
    return w, b


def init_pnas_params(key, num_features, edge_dim, n_hidden, num_layers, deg_hist):
    H = n_hidden
    keys = jax.random.split(key, 2 + num_layers)
    params = {}
    params["node_emb"] = init_linear(keys[0], num_features, H)
    params["edge_emb"] = init_linear(keys[1], edge_dim, H)

    # PNA degree statistics (PyG DegreeScalerAggregation avg_deg['log']).
    hist = jnp.asarray(deg_hist, jnp.float32)
    bins = jnp.arange(hist.shape[0], dtype=jnp.float32)
    params["avg_deg_log"] = float(jnp.sum(jnp.log(bins + 1.0) * hist) / jnp.sum(hist))

    layers = []
    for li in range(num_layers):
        lk = jax.random.split(keys[2 + li], 6)
        w_enc, b_enc = init_linear(lk[0], H, H)          # PNAConv.edge_encoder
        w_pre, b_pre = init_linear(lk[1], 3 * H, H)      # PNAConv.pre_nns[0]
        w_post, b_post = init_linear(lk[2], 13 * H, H)   # PNAConv.post_nns[0]
        w_lin, b_lin = init_linear(lk[3], H, H)          # PNAConv.lin
        w_e1, b_e1 = init_linear(lk[4], 3 * H, H)        # edge-update MLP layer 1
        w_e2, b_e2 = init_linear(lk[5], H, H)            # edge-update MLP layer 2

        # fold edge_encoder into pre_nn (valid: no nonlinearity, pre_layers=1)
        w_msg = jnp.concatenate([w_pre[0:2 * H], w_enc @ w_pre[2 * H:3 * H]], axis=0)
        b_msg = b_enc @ w_pre[2 * H:3 * H] + b_pre

        # fold post_nn into lin (valid: no nonlinearity, post_layers=1);
        # split by x / scaler blocks and fuse the 3 scaler blocks into (4H,3H)
        w_pl = w_post @ w_lin                            # (13H, H)
        b_pl = b_post @ w_lin + b_lin
        w_px = w_pl[0:H]
        w_post_fused = jnp.concatenate(
            [w_pl[H:5 * H], w_pl[5 * H:9 * H], w_pl[9 * H:13 * H]], axis=1)

        layers.append({
            "w_msg": w_msg, "b_msg": b_msg,
            "w_px": w_px, "w_post": w_post_fused, "b_pl": b_pl,
            "bn_gamma": jnp.ones((H,), jnp.float32),
            "bn_beta": jnp.zeros((H,), jnp.float32),
            "w_e1": w_e1, "b_e1": b_e1, "w_e2": w_e2, "b_e2": b_e2,
        })
    params["layers"] = layers
    return params


# ----------------------------------------------------------------------------
# Model forward (glue in plain JAX, hot paths in Pallas kernels)
# NOTE: edge_index must be concrete (host-side edge sorting + per-node-tile
#       edge-block ranges for the scalar-prefetched aggregation grid).
# ----------------------------------------------------------------------------
def pnas_forward(params, x, edge_index, edge_attr):
    N = x.shape[0]
    E = edge_attr.shape[0]
    tn, te = _AGG_TN, _AGG_TE
    Np = _round_up(max(N, tn), tn)
    Ep = _round_up(max(E, te), te)

    src = jnp.asarray(edge_index[0], jnp.int32)
    dst = jnp.asarray(edge_index[1], jnp.int32)
    perm = jnp.argsort(dst)                  # sort edges by destination
    inv_perm = jnp.argsort(perm)
    src_s = jnp.take(src, perm)
    dst_s = jnp.take(dst, perm)

    pad_e = Ep - E
    if pad_e:
        dst_p = jnp.concatenate([dst_s, jnp.full((pad_e,), Np, jnp.int32)])
        src_p = jnp.concatenate([src_s, jnp.zeros((pad_e,), jnp.int32)])
    else:
        dst_p, src_p = dst_s, src_s
    dst_gather = jnp.minimum(dst_p, Np - 1)
    src_gather = jnp.minimum(src_p, Np - 1)

    # host-side per-node-tile edge-block ranges (scalar-prefetched into SMEM)
    dst_np = np.asarray(jax.device_get(dst_p))
    num_ntiles = Np // tn
    nblocks = Ep // te
    bounds = np.arange(num_ntiles + 1, dtype=np.int64) * tn
    lo = np.searchsorted(dst_np, bounds[:-1], side="left")
    hi = np.searchsorted(dst_np, bounds[1:], side="left")
    sb = np.minimum(lo // te, nblocks - 1).astype(np.int32)
    nb = np.where(hi > lo, (hi + te - 1) // te - lo // te, 1).astype(np.int32)
    nb = np.maximum(nb, 1)
    max_nb = int(nb.max())
    start_blk = jnp.asarray(sb, jnp.int32)
    num_blk = jnp.asarray(nb, jnp.int32)

    # pad once; everything below stays padded / edge-sorted until the very end
    x_feat = _pad_rows(x.reshape(N, -1).astype(jnp.float32), Np)
    ea = jnp.take(edge_attr.reshape(E, -1).astype(jnp.float32), perm, axis=0)
    ea = _pad_rows(ea, Ep)
    xh = pallas_linear(x_feat, *params["node_emb"])
    eh = pallas_linear(ea, *params["edge_emb"])

    avg_deg_log = params["avg_deg_log"]
    for layer in params["layers"]:
        # PNAConv message with folded edge_encoder (x_i = x[dst], x_j = x[src])
        x_dst = jnp.take(xh, dst_gather, axis=0)
        x_src = jnp.take(xh, src_gather, axis=0)
        msgs = edge_messages(x_dst, x_src, eh, layer["w_msg"], layer["b_msg"])
        # aggregation + degree scalers + post_nn∘lin + BN partial stats, fused
        conv, bns1, bns2 = pna_aggregate_post(
            msgs, dst_p, xh, layer["w_px"], layer["w_post"], layer["b_pl"],
            avg_deg_log, start_blk, num_blk, max_nb, N)
        # global BatchNorm training-mode stats from the fused per-tile partials
        mu = jnp.sum(bns1, axis=0, keepdims=True) / (8.0 * N)
        ex2 = jnp.sum(bns2, axis=0, keepdims=True) / (8.0 * N)
        var = jnp.maximum(ex2 - mu * mu, 0.0)
        xh = bn_relu_residual(xh, conv, mu, var, layer["bn_gamma"], layer["bn_beta"])
        # edge update: e = e + emlp([x[src], x[dst], e]) / 2
        xs2 = jnp.take(xh, src_gather, axis=0)
        xd2 = jnp.take(xh, dst_gather, axis=0)
        eh = edge_mlp_residual(xs2, xd2, eh, layer["w_e1"], layer["b_e1"],
                               layer["w_e2"], layer["b_e2"])

    x_out = xh[:N]
    e_out = jnp.take(eh[:E], inv_perm, axis=0)   # undo the dst-sort permutation
    return x_out, e_out


# ----------------------------------------------------------------------------
# Pure-JAX reference (same folded params) for a sanity check
# ----------------------------------------------------------------------------
def _reference_forward(params, x, edge_index, edge_attr):
    src = edge_index[0].astype(jnp.int32)
    dst = edge_index[1].astype(jnp.int32)
    N = x.shape[0]
    H = params["node_emb"][0].shape[1]
    avg = params["avg_deg_log"]
    xh = x.reshape(x.shape[0], -1) @ params["node_emb"][0] + params["node_emb"][1]
    eh = (edge_attr.reshape(edge_attr.shape[0], -1) @ params["edge_emb"][0]
          + params["edge_emb"][1])
    for layer in params["layers"]:
        msgs = (jnp.concatenate([xh[dst], xh[src], eh], axis=-1) @ layer["w_msg"]
                + layer["b_msg"])
        cnt = jax.ops.segment_sum(jnp.ones((msgs.shape[0],), jnp.float32), dst,
                                  num_segments=N)[:, None]
        deg = jnp.maximum(cnt, 1.0)
        s1 = jax.ops.segment_sum(msgs, dst, num_segments=N)
        s2 = jax.ops.segment_sum(msgs * msgs, dst, num_segments=N)
        mean = s1 / deg
        var = s2 / deg - mean * mean
        std = jnp.sqrt(jnp.maximum(var, 0.0) + 1e-5)
        has = cnt > 0.0
        mn = jnp.where(has, jax.ops.segment_min(msgs, dst, num_segments=N), 0.0)
        mx = jnp.where(has, jax.ops.segment_max(msgs, dst, num_segments=N), 0.0)
        agg4 = jnp.concatenate([mean, mn, mx, std], axis=-1)
        logd = jnp.log(deg + 1.0)
        amp, att = logd / avg, avg / logd
        y = agg4 @ layer["w_post"]
        conv = (xh @ layer["w_px"] + y[:, 0:H] + amp * y[:, H:2 * H]
                + att * y[:, 2 * H:3 * H] + layer["b_pl"])
        mu = jnp.mean(conv, axis=0, keepdims=True)
        v = jnp.mean((conv - mu) ** 2, axis=0, keepdims=True)
        yhat = (conv - mu) * jax.lax.rsqrt(v + 1e-5) * layer["bn_gamma"] + layer["bn_beta"]
        xh = (xh + jnp.maximum(yhat, 0.0)) * 0.5
        h1 = jnp.maximum(jnp.concatenate([xh[src], xh[dst], eh], axis=-1) @ layer["w_e1"]
                         + layer["b_e1"], 0.0)
        eh = eh + (h1 @ layer["w_e2"] + layer["b_e2"]) * 0.5
    return xh, eh


# ----------------------------------------------------------------------------
# Demo
# ----------------------------------------------------------------------------
if __name__ == "__main__":
    num_nodes = 192
    num_edges = 384
    num_features = 16
    edge_dim = 8
    n_hidden = 128          # module default; keeps outputs lane-dense
    num_gnn_layers = 2

    key = jax.random.PRNGKey(0)
    k_x, k_e, k_src, k_dst, k_par = jax.random.split(key, 5)

    x = jax.random.normal(k_x, (num_nodes, num_features), jnp.float32)
    edge_attr = jax.random.normal(k_e, (num_edges, edge_dim), jnp.float32)
    src = jax.random.randint(k_src, (num_edges,), 0, num_nodes, jnp.int32)
    dst = jax.random.randint(k_dst, (num_edges,), 0, num_nodes, jnp.int32)
    edge_index = jnp.stack([src, dst], axis=0)

    # Synthetic in-degree histogram (the `deg` constructor argument).
    deg_hist = jnp.array([0.0, 3.0, 5.0, 4.0, 2.0, 1.0, 1.0], jnp.float32)

    params = init_pnas_params(
        k_par, num_features, edge_dim, n_hidden, num_gnn_layers, deg_hist
    )

    x_out, e_out = pnas_forward(params, x, edge_index, edge_attr)
    jax.block_until_ready((x_out, e_out))
    assert x_out.shape == (num_nodes, n_hidden)
    assert e_out.shape == (num_edges, n_hidden)

    # sanity check against a pure-JAX reference (loose tol: MXU vs XLA paths,
    # approx reciprocal for the attenuation scaler, sorted-edge summation order)
    x_ref, e_ref = _reference_forward(params, x, edge_index, edge_attr)
    err = max(float(jnp.max(jnp.abs(x_out - x_ref))),
              float(jnp.max(jnp.abs(e_out - e_ref))))
    assert err < 5e-2, f"mismatch vs reference: {err}"

    print("KERNEL_OK")
</pallas_src>

<mosaic_0001>
module attributes {stable_mosaic.version = 11 : i64} {
  func.func @_linear_kernel(%arg0: i32, %arg1: memref<256x16xf32, #tpu.memory_space<vmem>>, %arg2: memref<16x128xf32, #tpu.memory_space<vmem>>, %arg3: memref<1x128xf32, #tpu.memory_space<vmem>>, %arg4: memref<256x128xf32, #tpu.memory_space<vmem>>) attributes {dimension_semantics = [#tpu.dimension_semantics<parallel>], iteration_bounds = array<i64: 1>, scalar_prefetch = 0 : i64, scratch_operands = 0 : i64, tpu.core_type = #tpu.core_type<tc>, window_params = [{transform_indices = @transform_0, window_bounds = array<i64: 256, 16>}, {pipeline_mode = #tpu.pipeline_mode<synchronous>, transform_indices = @transform_1, window_bounds = array<i64: 16, 128>}, {pipeline_mode = #tpu.pipeline_mode<synchronous>, transform_indices = @transform_2, window_bounds = array<i64: 1, 128>}, {transform_indices = @transform_3, window_bounds = array<i64: 256, 128>}]} {
    %c0 = arith.constant 0 : index
    %c0_0 = arith.constant 0 : index
    %0 = vector.load %arg1[%c0, %c0_0] : memref<256x16xf32, #tpu.memory_space<vmem>>, vector<256x16xf32>
    %c0_1 = arith.constant 0 : index
    %c0_2 = arith.constant 0 : index
    %1 = vector.load %arg2[%c0_1, %c0_2] : memref<16x128xf32, #tpu.memory_space<vmem>>, vector<16x128xf32>
    %cst = arith.constant dense<0.000000e+00> : vector<256x128xf32>
    %2 = tpu.matmul %0, %1, %cst {dimension_numbers = #tpu.dot_dimension_numbers<[1], [0], [0], [1], [0, 0, 1, 1], [], []>} : vector<256x16xf32>, vector<16x128xf32>, vector<256x128xf32> -> vector<256x128xf32>
    %c0_3 = arith.constant 0 : index
    %c0_4 = arith.constant 0 : index
    %3 = vector.load %arg3[%c0_3, %c0_4] : memref<1x128xf32, #tpu.memory_space<vmem>>, vector<1x128xf32>
    %4 = vector.broadcast %3 : vector<1x128xf32> to vector<256x128xf32>
    %5 = arith.addf %2, %4 : vector<256x128xf32>
    %c0_5 = arith.constant 0 : index
    %c0_6 = arith.constant 0 : index
    %6 = vector.load %arg4[%c0_5, %c0_6] : memref<256x128xf32, #tpu.memory_space<vmem>>, vector<256x128xf32>
    tpu.vector_store %arg4[%c0_5, %c0_6], %5 {strides = array<i32>} : memref<256x128xf32, #tpu.memory_space<vmem>>, vector<256x128xf32>,
    return
  }
  func.func @transform_0(%arg0: i32) -> (i32, i32) {
    %c0_i32 = arith.constant 0 : i32
    %c0_i32_0 = arith.constant 0 : i32
    return %arg0, %c0_i32 : i32, i32
  }
  func.func @transform_1(%arg0: i32) -> (i32, i32) {
    %c0_i32 = arith.constant 0 : i32
    %c0_i32_0 = arith.constant 0 : i32
    %c0_i32_1 = arith.constant 0 : i32
    return %c0_i32, %c0_i32_0 : i32, i32
  }
  func.func @transform_2(%arg0: i32) -> (i32, i32) {
    %c0_i32 = arith.constant 0 : i32
    %c0_i32_0 = arith.constant 0 : i32
    %c0_i32_1 = arith.constant 0 : i32
    return %c0_i32, %c0_i32_0 : i32, i32
  }
  func.func @transform_3(%arg0: i32) -> (i32, i32) {
    %c0_i32 = arith.constant 0 : i32
    %c0_i32_0 = arith.constant 0 : i32
    return %arg0, %c0_i32 : i32, i32
  }
}

</mosaic_0001>

<llo_original>
// kernel: tpu_custom_call.1
$region0: #{tpu_custom_call.1}
  #allocation0 [shape = 'u32[]', space=smem, size = 0x4, offset = 0x4, fixed_abs, tag = 'smem constant byte address 0x4 - core index']
  #allocation1 [shape = 'u32[144,128]{1,0:T(1,128)}', space=vmem, size = 0x12000, scoped, tag = 'internal scratch']
  %s0 = inlined_call_operand.vmem [shape: f32[256,16], index: 0, kind: input, shape index: {}]
  %s1 = inlined_call_operand.vmem [shape: f32[16,128], index: 1, kind: input, shape index: {}]
  %s2 = inlined_call_operand.vmem [shape: f32[1,128], index: 2, kind: input, shape index: {}]
  %s3 = inlined_call_operand.hbm [shape: f32[256,128], index: 3, kind: output, shape index: {}]
  %s4 = sld [smem:[#allocation0]]
  $region22: #{tpu_custom_call.1} parent=0
    _
  %s6 = ssub.s32 1, %s4
  %s7 = scalar_select 0, %s6, %s4
  $region1: #{tpu_custom_call.1} parent=0
    #allocation2 [shape = 'u8[131072]{0}', space=vmem, size = 0x20000, scoped, tag = 'output window, operand 0, single buffered']
    #allocation3 [shape = 's32[1]{0}', space=sflag, size = 0x4, scoped, tag = 'scoped memory for tpu_custom_call.1']
    %8 = vsyncpa [#allocation3], 0
    // Predicated region
    $region2: #{tpu_custom_call.1} parent=1 // pred_check
      _
    $region3: #{tpu_custom_call.1} parent=1 // pred_check_branch
      %10 = sbr.rel (0) target = $region5
    $region4: #{tpu_custom_call.1} parent=1 // pred_region
      _
    $region5: #{tpu_custom_call.1} parent=1 // pred_fallthru
      _
    // Predicated region
    $region6: #{tpu_custom_call.1} parent=1 // pred_check
      _
    $region7: #{tpu_custom_call.1} parent=1 // pred_check_branch
      %12 = sbr.rel (0) target = $region9
    $region8: #{tpu_custom_call.1} parent=1 // pred_region
      _
    $region9: #{tpu_custom_call.1} parent=1 // pred_fallthru
      _
    // Predicated region
    $region10: #{tpu_custom_call.1} parent=1 // pred_check
      _
    $region11: #{tpu_custom_call.1} parent=1 // pred_check_branch
      %14 = sbr.rel (0) target = $region13
    $region12: #{tpu_custom_call.1} parent=1 // pred_region
      _
    $region13: #{tpu_custom_call.1} parent=1 // pred_fallthru
      _
    %v15 = vld [vmem:[%s0] sm:$0xff]
    %v16 = vld [vmem:[%s0 + $0x8] sm:$0xff]
    %v17 = vld [vmem:[%s0 + $0x10] sm:$0xff]
    %v18 = vld [vmem:[%s0 + $0x18] sm:$0xff]
    %v19 = vld [vmem:[%s0 + $0x20] sm:$0xff]
    %v20 = vld [vmem:[%s0 + $0x28] sm:$0xff]
    %v21 = vld [vmem:[%s0 + $0x30] sm:$0xff]
    %v22 = vld [vmem:[%s0 + $0x38] sm:$0xff]
    %v23 = vld [vmem:[%s0 + $0x40] sm:$0xff]
    %v24 = vld [vmem:[%s0 + $0x48] sm:$0xff]
    %v25 = vld [vmem:[%s0 + $0x50] sm:$0xff]
    %v26 = vld [vmem:[%s0 + $0x58] sm:$0xff]
    %v27 = vld [vmem:[%s0 + $0x60] sm:$0xff]
    %v28 = vld [vmem:[%s0 + $0x68] sm:$0xff]
    %v29 = vld [vmem:[%s0 + $0x70] sm:$0xff]
    %v30 = vld [vmem:[%s0 + $0x78] sm:$0xff]
    %v31 = vld [vmem:[%s0 + $0x80] sm:$0xff]
    %v32 = vld [vmem:[%s0 + $0x88] sm:$0xff]
    %v33 = vld [vmem:[%s0 + $0x90] sm:$0xff]
    %v34 = vld [vmem:[%s0 + $0x98] sm:$0xff]
    %v35 = vld [vmem:[%s0 + $0xa0] sm:$0xff]
    %v36 = vld [vmem:[%s0 + $0xa8] sm:$0xff]
    %v37 = vld [vmem:[%s0 + $0xb0] sm:$0xff]
    %v38 = vld [vmem:[%s0 + $0xb8] sm:$0xff]
    %v39 = vld [vmem:[%s0 + $0xc0] sm:$0xff]
    %v40 = vld [vmem:[%s0 + $0xc8] sm:$0xff]
    %v41 = vld [vmem:[%s0 + $0xd0] sm:$0xff]
    %v42 = vld [vmem:[%s0 + $0xd8] sm:$0xff]
    %v43 = vld [vmem:[%s0 + $0xe0] sm:$0xff]
    %v44 = vld [vmem:[%s0 + $0xe8] sm:$0xff]
    %v45 = vld [vmem:[%s0 + $0xf0] sm:$0xff]
    %v46 = vld [vmem:[%s0 + $0xf8] sm:$0xff]
    %v47 = vld [vmem:[%s1] sm:$0xff]
    %v48 = vld [vmem:[%s1 + $0x8] sm:$0xff]
    %v49 = vld [vmem:[%s2] sm:$0x1]
    %v51 = vlaneseq
    %v52 = vshrl.u32 %v51, 7
    %v53 = vsub.s32 0, %v52
    %v54 = vrot.slane %v49, %v53
    %vm56 = vcmask 130048
    %v58 = vsel %vm56, %v15, 0
    %v61 = vsel %vm56, %v16, 0
    %v64 = vsel %vm56, %v17, 0
    %v67 = vsel %vm56, %v18, 0
    %v70 = vsel %vm56, %v19, 0
    %v73 = vsel %vm56, %v20, 0
    %v76 = vsel %vm56, %v21, 0
    %v79 = vsel %vm56, %v22, 0
    %v82 = vsel %vm56, %v23, 0
    %v85 = vsel %vm56, %v24, 0
    %v88 = vsel %vm56, %v25, 0
    %v91 = vsel %vm56, %v26, 0
    %v94 = vsel %vm56, %v27, 0
    %v97 = vsel %vm56, %v28, 0
    %v100 = vsel %vm56, %v29, 0
    %v103 = vsel %vm56, %v30, 0
    %v106 = vsel %vm56, %v31, 0
    %v109 = vsel %vm56, %v32, 0
    %v112 = vsel %vm56, %v33, 0
    %v115 = vsel %vm56, %v34, 0
    %v118 = vsel %vm56, %v35, 0
    %v121 = vsel %vm56, %v36, 0
    %v124 = vsel %vm56, %v37, 0
    %v127 = vsel %vm56, %v38, 0
    %v130 = vsel %vm56, %v39, 0
    %v133 = vsel %vm56, %v40, 0
    %v136 = vsel %vm56, %v41, 0
    %v139 = vsel %vm56, %v42, 0
    %v142 = vsel %vm56, %v43, 0
    %v145 = vsel %vm56, %v44, 0
    %v148 = vsel %vm56, %v45, 0
    %v151 = vsel %vm56, %v46, 0
    %153 = vmatprep.subr.mxu0 0.0
    %154 = vmatpush1.msra.mxu0 0.0
    %155 = vmatprep.subr.mxu0 0.0
    %156 = vmatpush1.msra.mxu0 0.0
    %157 = vmatprep.subr.mxu0 0.0
    %158 = vmatpush1.msra.mxu0 0.0
    %159 = vmatprep.subr.mxu0 0.0
    %160 = vmatpush1.msra.mxu0 0.0
    %161 = vmatprep.subr.mxu0 0.0
    %162 = vmatpush1.msra.mxu0 0.0
    %163 = vmatprep.subr.mxu0 0.0
    %164 = vmatpush1.msra.mxu0 0.0
    %165 = vmatprep.subr.mxu0 0.0
    %166 = vmatpush1.msra.mxu0 0.0
    %167 = vmatprep.subr.mxu0 0.0
    %168 = vmatpush1.msra.mxu0 0.0
    %169 = vmatprep.subr.mxu0 0.0
    %170 = vmatpush1.msra.mxu0 0.0
    %171 = vmatprep.subr.mxu0 0.0
    %172 = vmatpush1.msra.mxu0 0.0
    %173 = vmatprep.subr.mxu0 0.0
    %174 = vmatpush1.msra.mxu0 0.0
    %175 = vmatprep.subr.mxu0 0.0
    %176 = vmatpush1.msra.mxu0 0.0
    %177 = vmatprep.subr.mxu0 0.0
    %178 = vmatpush1.msra.mxu0 0.0
    %179 = vmatprep.subr.mxu0 0.0
    %180 = vmatpush1.msra.mxu0 0.0
    %181 = vmatprep.subr.mxu0 0.0
    %182 = vmatpush1.msra.mxu0 %v48
    %183 = vmatprep.subr.mxu0 0.0
    %184 = vmatpush1.msra.mxu0 %v47
    %185 = vmatprep.subr.mxu0 0.0
    %186 = vmatpush2.msra.mxu0 0.0
    %187 = vmatprep.subr.mxu0 0.0
    %188 = vmatpush2.msra.mxu0 0.0
    %189 = vmatprep.subr.mxu0 0.0
    %190 = vmatpush2.msra.mxu0 0.0
    %191 = vmatprep.subr.mxu0 0.0
    %192 = vmatpush2.msra.mxu0 0.0
    %193 = vmatprep.subr.mxu0 0.0
    %194 = vmatpush2.msra.mxu0 0.0
    %195 = vmatprep.subr.mxu0 0.0
    %196 = vmatpush2.msra.mxu0 0.0
    %197 = vmatprep.subr.mxu0 0.0
    %198 = vmatpush2.msra.mxu0 0.0
    %199 = vmatprep.subr.mxu0 0.0
    %200 = vmatpush2.msra.mxu0 0.0
    %201 = vmatprep.subr.mxu0 0.0
    %202 = vmatpush2.msra.mxu0 0.0
    %203 = vmatprep.subr.mxu0 0.0
    %204 = vmatpush2.msra.mxu0 0.0
    %205 = vmatprep.subr.mxu0 0.0
    %206 = vmatpush2.msra.mxu0 0.0
    %207 = vmatprep.subr.mxu0 0.0
    %208 = vmatpush2.msra.mxu0 0.0
    %209 = vmatprep.subr.mxu0 0.0
    %210 = vmatpush2.msra.mxu0 0.0
    %211 = vmatprep.subr.mxu0 0.0
    %212 = vmatpush2.msra.mxu0 0.0
    %213 = vmatprep.subr.mxu0 0.0
    %214 = vmatpush2.msra.mxu0 0.0
    %215 = vmatprep.subr.mxu0 0.0
    %216 = vmatpush2.msra.mxu0 0.0
    %217 = vmatprep.mubr.f32.mxu0 0.0
    %218 = vmatmul.mubr.f32.gmra.mxu0 %v58
    %v219 = vpop.f32.mrf.mxu0
    %v220 = vadd.f32 %v54, %v219
    %v221 = vpop.f32.mrf.mxu0
    %222 = vmatprep.mubr.f32.mxu0 0.0
    %223 = vmatmul.mubr.f32.gmra.mxu0 %v61
    %v224 = vpop.f32.mrf.mxu0
    %v225 = vadd.f32 %v54, %v224
    %v226 = vpop.f32.mrf.mxu0
    %227 = vmatprep.mubr.f32.mxu0 0.0
    %228 = vmatmul.mubr.f32.gmra.mxu0 %v64
    %v229 = vpop.f32.mrf.mxu0
    %v230 = vadd.f32 %v54, %v229
    %v231 = vpop.f32.mrf.mxu0
    %232 = vmatprep.mubr.f32.mxu0 0.0
    %233 = vmatmul.mubr.f32.gmra.mxu0 %v67
    %v234 = vpop.f32.mrf.mxu0
    %v235 = vadd.f32 %v54, %v234
    %v236 = vpop.f32.mrf.mxu0
    %237 = vmatprep.mubr.f32.mxu0 0.0
    %238 = vmatmul.mubr.f32.gmra.mxu0 %v70
    %v239 = vpop.f32.mrf.mxu0
    %v240 = vadd.f32 %v54, %v239
    %v241 = vpop.f32.mrf.mxu0
    %242 = vmatprep.mubr.f32.mxu0 0.0
    %243 = vmatmul.mubr.f32.gmra.mxu0 %v73
    %v244 = vpop.f32.mrf.mxu0
    %v245 = vadd.f32 %v54, %v244
    %v246 = vpop.f32.mrf.mxu0
    %247 = vmatprep.mubr.f32.mxu0 0.0
    %248 = vmatmul.mubr.f32.gmra.mxu0 %v76
    %v249 = vpop.f32.mrf.mxu0
    %v250 = vadd.f32 %v54, %v249
    %v251 = vpop.f32.mrf.mxu0
    %252 = vmatprep.mubr.f32.mxu0 0.0
    %253 = vmatmul.mubr.f32.gmra.mxu0 %v79
    %v254 = vpop.f32.mrf.mxu0
    %v255 = vadd.f32 %v54, %v254
    %v256 = vpop.f32.mrf.mxu0
    %257 = vmatprep.mubr.f32.mxu0 0.0
    %258 = vmatmul.mubr.f32.gmra.mxu0 %v82
    %v259 = vpop.f32.mrf.mxu0
    %v260 = vadd.f32 %v54, %v259
    %v261 = vpop.f32.mrf.mxu0
    %262 = vmatprep.mubr.f32.mxu0 0.0
    %263 = vmatmul.mubr.f32.gmra.mxu0 %v85
    %v264 = vpop.f32.mrf.mxu0
    %v265 = vadd.f32 %v54, %v264
    %v266 = vpop.f32.mrf.mxu0
    %267 = vmatprep.mubr.f32.mxu0 0.0
    %268 = vmatmul.mubr.f32.gmra.mxu0 %v88
    %v269 = vpop.f32.mrf.mxu0
    %v270 = vadd.f32 %v54, %v269
    %v271 = vpop.f32.mrf.mxu0
    %272 = vmatprep.mubr.f32.mxu0 0.0
    %273 = vmatmul.mubr.f32.gmra.mxu0 %v91
    %v274 = vpop.f32.mrf.mxu0
    %v275 = vadd.f32 %v54, %v274
    %v276 = vpop.f32.mrf.mxu0
    %277 = vmatprep.mubr.f32.mxu0 0.0
    %278 = vmatmul.mubr.f32.gmra.mxu0 %v94
    %v279 = vpop.f32.mrf.mxu0
    %v280 = vadd.f32 %v54, %v279
    %v281 = vpop.f32.mrf.mxu0
    %282 = vmatprep.mubr.f32.mxu0 0.0
    %283 = vmatmul.mubr.f32.gmra.mxu0 %v97
    %v284 = vpop.f32.mrf.mxu0
    %v285 = vadd.f32 %v54, %v284
    %v286 = vpop.f32.mrf.mxu0
    %287 = vmatprep.mubr.f32.mxu0 0.0
    %288 = vmatmul.mubr.f32.gmra.mxu0 %v100
    %v289 = vpop.f32.mrf.mxu0
    %v290 = vadd.f32 %v54, %v289
    %v291 = vpop.f32.mrf.mxu0
    %292 = vmatprep.mubr.f32.mxu0 0.0
    %293 = vmatmul.mubr.f32.gmra.mxu0 %v103
    %v294 = vpop.f32.mrf.mxu0
    %v295 = vadd.f32 %v54, %v294
    %v296 = vpop.f32.mrf.mxu0
    %297 = vmatprep.mubr.f32.mxu0 0.0
    %298 = vmatmul.mubr.f32.gmra.mxu0 %v106
    %v299 = vpop.f32.mrf.mxu0
    %v300 = vadd.f32 %v54, %v299
    %v301 = vpop.f32.mrf.mxu0
    %302 = vmatprep.mubr.f32.mxu0 0.0
    %303 = vmatmul.mubr.f32.gmra.mxu0 %v109
    %v304 = vpop.f32.mrf.mxu0
    %v305 = vadd.f32 %v54, %v304
    %v306 = vpop.f32.mrf.mxu0
    %307 = vmatprep.mubr.f32.mxu0 0.0
    %308 = vmatmul.mubr.f32.gmra.mxu0 %v112
    %v309 = vpop.f32.mrf.mxu0
    %v310 = vadd.f32 %v54, %v309
    %v311 = vpop.f32.mrf.mxu0
    %312 = vmatprep.mubr.f32.mxu0 0.0
    %313 = vmatmul.mubr.f32.gmra.mxu0 %v115
    %v314 = vpop.f32.mrf.mxu0
    %v315 = vadd.f32 %v54, %v314
    %v316 = vpop.f32.mrf.mxu0
    %317 = vmatprep.mubr.f32.mxu0 0.0
    %318 = vmatmul.mubr.f32.gmra.mxu0 %v118
    %v319 = vpop.f32.mrf.mxu0
    %v320 = vadd.f32 %v54, %v319
    %v321 = vpop.f32.mrf.mxu0
    %322 = vmatprep.mubr.f32.mxu0 0.0
    %323 = vmatmul.mubr.f32.gmra.mxu0 %v121
    %v324 = vpop.f32.mrf.mxu0
    %v325 = vadd.f32 %v54, %v324
    %v326 = vpop.f32.mrf.mxu0
    %327 = vmatprep.mubr.f32.mxu0 0.0
    %328 = vmatmul.mubr.f32.gmra.mxu0 %v124
    %v329 = vpop.f32.mrf.mxu0
    %v330 = vadd.f32 %v54, %v329
    %v331 = vpop.f32.mrf.mxu0
    %332 = vmatprep.mubr.f32.mxu0 0.0
    %333 = vmatmul.mubr.f32.gmra.mxu0 %v127
    %v334 = vpop.f32.mrf.mxu0
    %v335 = vadd.f32 %v54, %v334
    %v336 = vpop.f32.mrf.mxu0
    %337 = vmatprep.mubr.f32.mxu0 0.0
    %338 = vmatmul.mubr.f32.gmra.mxu0 %v130
    %v339 = vpop.f32.mrf.mxu0
    %v340 = vadd.f32 %v54, %v339
    %v341 = vpop.f32.mrf.mxu0
    %342 = vmatprep.mubr.f32.mxu0 0.0
    %343 = vmatmul.mubr.f32.gmra.mxu0 %v133
    %v344 = vpop.f32.mrf.mxu0
    %v345 = vadd.f32 %v54, %v344
    %v346 = vpop.f32.mrf.mxu0
    %347 = vmatprep.mubr.f32.mxu0 0.0
    %348 = vmatmul.mubr.f32.gmra.mxu0 %v136
    %v349 = vpop.f32.mrf.mxu0
    %v350 = vadd.f32 %v54, %v349
    %v351 = vpop.f32.mrf.mxu0
    %352 = vmatprep.mubr.f32.mxu0 0.0
    %353 = vmatmul.mubr.f32.gmra.mxu0 %v139
    %v354 = vpop.f32.mrf.mxu0
    %v355 = vadd.f32 %v54, %v354
    %v356 = vpop.f32.mrf.mxu0
    %357 = vmatprep.mubr.f32.mxu0 0.0
    %358 = vmatmul.mubr.f32.gmra.mxu0 %v142
    %v359 = vpop.f32.mrf.mxu0
    %v360 = vadd.f32 %v54, %v359
    %v361 = vpop.f32.mrf.mxu0
    %362 = vmatprep.mubr.f32.mxu0 0.0
    %363 = vmatmul.mubr.f32.gmra.mxu0 %v145
    %v364 = vpop.f32.mrf.mxu0
    %v365 = vadd.f32 %v54, %v364
    %v366 = vpop.f32.mrf.mxu0
    %367 = vmatprep.mubr.f32.mxu0 0.0
    %368 = vmatmul.mubr.f32.gmra.mxu0 %v148
    %v369 = vpop.f32.mrf.mxu0
    %v370 = vadd.f32 %v54, %v369
    %v371 = vpop.f32.mrf.mxu0
    %372 = vmatprep.mubr.f32.mxu0 0.0
    %373 = vmatmul.mubr.f32.gmra.mxu0 %v151
    %v374 = vpop.f32.mrf.mxu0
    %v375 = vadd.f32 %v54, %v374
    %v376 = vpop.f32.mrf.mxu0
    %377 = vdwg.mxu0
    %378 = vst [vmem:[#allocation2] sm:$0xff] %v220
    %379 = vst [vmem:[#allocation2 + $0x8] sm:$0xff] %v225
    %380 = vst [vmem:[#allocation2 + $0x10] sm:$0xff] %v230
    %381 = vst [vmem:[#allocation2 + $0x18] sm:$0xff] %v235
    %382 = vst [vmem:[#allocation2 + $0x20] sm:$0xff] %v240
    %383 = vst [vmem:[#allocation2 + $0x28] sm:$0xff] %v245
    %384 = vst [vmem:[#allocation2 + $0x30] sm:$0xff] %v250
    %385 = vst [vmem:[#allocation2 + $0x38] sm:$0xff] %v255
    %386 = vst [vmem:[#allocation2 + $0x40] sm:$0xff] %v260
    %387 = vst [vmem:[#allocation2 + $0x48] sm:$0xff] %v265
    %388 = vst [vmem:[#allocation2 + $0x50] sm:$0xff] %v270
    %389 = vst [vmem:[#allocation2 + $0x58] sm:$0xff] %v275
    %390 = vst [vmem:[#allocation2 + $0x60] sm:$0xff] %v280
    %391 = vst [vmem:[#allocation2 + $0x68] sm:$0xff] %v285
    %392 = vst [vmem:[#allocation2 + $0x70] sm:$0xff] %v290
    %393 = vst [vmem:[#allocation2 + $0x78] sm:$0xff] %v295
    %394 = vst [vmem:[#allocation2 + $0x80] sm:$0xff] %v300
    %395 = vst [vmem:[#allocation2 + $0x88] sm:$0xff] %v305
    %396 = vst [vmem:[#allocation2 + $0x90] sm:$0xff] %v310
    %397 = vst [vmem:[#allocation2 + $0x98] sm:$0xff] %v315
    %398 = vst [vmem:[#allocation2 + $0xa0] sm:$0xff] %v320
    %399 = vst [vmem:[#allocation2 + $0xa8] sm:$0xff] %v325
    %400 = vst [vmem:[#allocation2 + $0xb0] sm:$0xff] %v330
    %401 = vst [vmem:[#allocation2 + $0xb8] sm:$0xff] %v335
    %402 = vst [vmem:[#allocation2 + $0xc0] sm:$0xff] %v340
    %403 = vst [vmem:[#allocation2 + $0xc8] sm:$0xff] %v345
    %404 = vst [vmem:[#allocation2 + $0xd0] sm:$0xff] %v350
    %405 = vst [vmem:[#allocation2 + $0xd8] sm:$0xff] %v355
    %406 = vst [vmem:[#allocation2 + $0xe0] sm:$0xff] %v360
    %407 = vst [vmem:[#allocation2 + $0xe8] sm:$0xff] %v365
    %408 = vst [vmem:[#allocation2 + $0xf0] sm:$0xff] %v370
    %409 = vst [vmem:[#allocation2 + $0xf8] sm:$0xff] %v375
    // Predicated region
    $region14: #{tpu_custom_call.1} parent=1 // pred_check
      _
    $region15: #{tpu_custom_call.1} parent=1 // pred_check_branch
      %411 = sbr.rel (0) target = $region17
    $region16: #{tpu_custom_call.1} parent=1 // pred_region
      %s413 = ssub.s32 4096, 4096
      %414 = vsyncadd [#allocation3], %s413
      %s415 = sshll.u32 [#allocation2], 4
      %s416 = int_to_ptr.vmem [resolvable:$true] %s415
      %421 = dma.vmem_to_hbm [thread:$0]  %s416, 4096, %s3, [#allocation3], 128, 128, 8
    $region17: #{tpu_custom_call.1} parent=1 // pred_fallthru
      _
    // Predicated region
    $region18: #{tpu_custom_call.1} parent=1 // pred_check
      _
    $region19: #{tpu_custom_call.1} parent=1 // pred_check_branch
      %423 = sbr.rel (0) target = $region21
    $region20: #{tpu_custom_call.1} parent=1 // pred_region
      %424 = dma.done [#allocation3], 4096
    $region21: #{tpu_custom_call.1} parent=1 // pred_fallthru
      _
    %425 = vsyncpa [#allocation3], 1

</llo_original>
